<compile_context>
chip_gen: v5e
topology: v5e:2x2
jax: 0.10.0
libtpu: 0.0.40
codegen_flags: <defaults>
</compile_context>

<pallas_src>
import functools

import jax
import jax.numpy as jnp
from jax import lax
from jax.experimental import pallas as pl
from jax.experimental.pallas import tpu as pltpu

_LANE = 128  # vreg lane width
_SUB = 8     # f32 sublane packing


def _round_up(x, m):
    return ((x + m - 1) // m) * m


def _chip_config():
    """Returns (num_shards, core_parallel, max_block_bytes, vmem_limit_bytes)."""
    try:
        kind = jax.devices()[0].device_kind.lower()
    except Exception:
        kind = ""
    if "v7" in kind or "7x" in kind:
        # 2 TensorCores/chip: shard the stream across cores, 4 MiB blocks.
        return 2, True, 4 << 20, 32 << 20
    if "v6" in kind:
        # 1 TC, 128 MiB physical VMEM: 4 MiB blocks amortize per-step cost.
        return 1, False, 4 << 20, 64 << 20
    # v5e / unknown: conservative, stays inside 16 MiB default scoped VMEM.
    return 1, False, 2 << 20, None


def _sse_kernel(a_ref, b_ref, out_ref, acc_ref, *,
                nrows, bpc, need_mask, acc_rows):
    """Per-shard partial sum of (a-b)^2 over this shard's row blocks."""
    j = pl.program_id(1)  # reduction axis within the shard

    @pl.when(j == 0)
    def _():
        acc_ref[...] = jnp.zeros_like(acc_ref)

    d = a_ref[...].astype(jnp.float32) - b_ref[...].astype(jnp.float32)
    block_rows = d.shape[0]

    def accumulate(x):
        # Fold (block_rows, 128) -> (acc_rows, 128): pure VPU vreg adds,
        # no per-step cross-lane work.
        acc_ref[...] += (x * x).reshape(-1, acc_rows, _LANE).sum(axis=0)

    if need_mask:
        c = pl.program_id(0)
        row0 = (c * bpc + j) * block_rows  # un-clamped logical row offset
        is_partial = row0 + block_rows > nrows

        @pl.when(jnp.logical_not(is_partial))
        def _():
            accumulate(d)  # full block: zero mask cost

        @pl.when(is_partial)
        def _():
            # Only the ragged (or clamped duplicate) block pays iota/select.
            row_ids = row0 + lax.broadcasted_iota(jnp.int32, d.shape, 0)
            accumulate(jnp.where(row_ids < nrows, d, 0.0))
    else:
        accumulate(d)

    @pl.when(j == pl.num_programs(1) - 1)
    def _():
        # Single final cross-lane/sublane reduce to this shard's scalar.
        out_ref[0, 0] = jnp.sum(acc_ref[...])


@jax.jit
def ct_loss(a, b):
    """loss = mean((a - b)**2) over all elements, computed in Pallas."""
    assert a.shape == b.shape, (a.shape, b.shape)
    n = a.size
    itemsize = jnp.dtype(a.dtype).itemsize
    pack = max(_SUB, 32 // itemsize)  # sublane packing: 8 f32, 16 bf16, 32 int8

    af = a.reshape(-1)
    bf = b.reshape(-1)
    # Pad only when numel is not lane-aligned (never for this model's shapes);
    # zero-padding both inputs contributes 0 to the sum of squared diffs.
    if n % _LANE != 0:
        pad = _LANE - n % _LANE
        af = jnp.pad(af, (0, pad))
        bf = jnp.pad(bf, (0, pad))
    rows = af.size // _LANE
    a2 = af.reshape(rows, _LANE)
    b2 = bf.reshape(rows, _LANE)

    shards, core_parallel, max_block_bytes, vmem_limit = _chip_config()

    max_block_rows = max_block_bytes // (_LANE * itemsize)  # dtype-aware
    block_rows = min(max_block_rows, _round_up(rows, pack))
    num_blocks = pl.cdiv(rows, block_rows)
    if num_blocks < 2 * shards:
        # Tiny input: sharding would duplicate-and-fully-mask a whole block of
        # HBM traffic for zero benefit; collapse to a single reduction stream.
        shards = 1
        core_parallel = False
    bpc = pl.cdiv(num_blocks, shards)  # blocks per shard
    last_block = num_blocks - 1
    need_mask = (shards * bpc * block_rows) != rows
    acc_rows = 32 if block_rows % 32 == 0 else pack  # wider acc for big blocks

    def in_map(c, j):
        blk = c * bpc + j
        if need_mask:
            blk = jnp.minimum(blk, last_block)  # keep every DMA in bounds
        return (blk, 0)

    kernel = functools.partial(
        _sse_kernel, nrows=rows, bpc=bpc, need_mask=need_mask,
        acc_rows=acc_rows)

    if core_parallel:
        dim_sem = (pltpu.CORE_PARALLEL, pltpu.ARBITRARY)
    else:
        dim_sem = ("arbitrary", "arbitrary")

    cost = pl.CostEstimate(
        flops=3 * n,                               # sub + mul + add per element
        transcendentals=0,
        bytes_accessed=2 * n * itemsize + 4 * shards)

    partials = pl.pallas_call(
        kernel,
        out_shape=jax.ShapeDtypeStruct((shards, 1), jnp.float32),
        grid=(shards, bpc),
        in_specs=[
            pl.BlockSpec((block_rows, _LANE), in_map),
            pl.BlockSpec((block_rows, _LANE), in_map),
        ],
        out_specs=pl.BlockSpec((1, 1), lambda c, j: (c, 0),
                               memory_space=pltpu.SMEM),
        scratch_shapes=[pltpu.VMEM((acc_rows, _LANE), jnp.float32)],
        compiler_params=pltpu.CompilerParams(
            dimension_semantics=dim_sem,
            vmem_limit_bytes=vmem_limit),
        cost_estimate=cost,
    )(a2, b2)

    return jnp.sum(partials) / jnp.float32(n)


if __name__ == "__main__":
    key = jax.random.PRNGKey(0)
    ka, kb = jax.random.split(key)

    # Small NCHW shapes consistent with the filtering network's outputs/targets.
    shape = (2, 4, 16, 16)
    a = jax.random.normal(ka, shape, dtype=jnp.float32)
    b = jax.random.normal(kb, shape, dtype=jnp.float32)

    loss = ct_loss(a, b)
    jax.block_until_ready(loss)

    # Reference check against plain-JAX mean((a-b)^2).
    ref = jnp.mean((a - b) ** 2)
    assert jnp.allclose(loss, ref, rtol=1e-5, atol=1e-6), (loss, ref)

    print("KERNEL_OK")
</pallas_src>

<mosaic_0001>
module attributes {stable_mosaic.version = 11 : i64} {
  func.func @_sse_kernel(%arg0: i32, %arg1: i32, %arg2: memref<16x128xf32, #tpu.memory_space<vmem>>, %arg3: memref<16x128xf32, #tpu.memory_space<vmem>>, %arg4: memref<1x1xf32, #tpu.memory_space<smem>>, %arg5: memref<8x128xf32, #tpu.memory_space<vmem>>) attributes {dimension_semantics = [#tpu.dimension_semantics<arbitrary>, #tpu.dimension_semantics<arbitrary>], iteration_bounds = array<i64: 1, 1>, scalar_prefetch = 0 : i64, scratch_operands = 1 : i64, tpu.core_type = #tpu.core_type<tc>, window_params = [{transform_indices = @transform_0, window_bounds = array<i64: 16, 128>}, {transform_indices = @transform_1, window_bounds = array<i64: 16, 128>}, {transform_indices = @transform_2, window_bounds = array<i64: 1, 1>}]} {
    %c0_i32 = arith.constant 0 : i32
    %0 = arith.cmpi eq, %arg1, %c0_i32 : i32
    %1 = arith.extui %0 : i1 to i32
    %c0_i32_0 = arith.constant 0 : i32
    %2 = arith.cmpi ne, %1, %c0_i32_0 : i32
    scf.if %2 {
      %cst_10 = arith.constant 0.000000e+00 : f32
      %15 = vector.broadcast %cst_10 : f32 to vector<8x128xf32>
      %c0_11 = arith.constant 0 : index
      %c0_12 = arith.constant 0 : index
      %16 = vector.load %arg5[%c0_11, %c0_12] : memref<8x128xf32, #tpu.memory_space<vmem>>, vector<8x128xf32>
      tpu.vector_store %arg5[%c0_11, %c0_12], %15 {strides = array<i32>} : memref<8x128xf32, #tpu.memory_space<vmem>>, vector<8x128xf32>,
    } else {
    }
    %c0 = arith.constant 0 : index
    %c0_1 = arith.constant 0 : index
    %3 = vector.load %arg2[%c0, %c0_1] : memref<16x128xf32, #tpu.memory_space<vmem>>, vector<16x128xf32>
    %c0_2 = arith.constant 0 : index
    %c0_3 = arith.constant 0 : index
    %4 = vector.load %arg3[%c0_2, %c0_3] : memref<16x128xf32, #tpu.memory_space<vmem>>, vector<16x128xf32>
    %5 = arith.subf %3, %4 : vector<16x128xf32>
    %c0_4 = arith.constant 0 : index
    %c0_5 = arith.constant 0 : index
    %6 = vector.load %arg5[%c0_4, %c0_5] : memref<8x128xf32, #tpu.memory_space<vmem>>, vector<8x128xf32>
    %7 = arith.mulf %5, %5 : vector<16x128xf32>
    %8 = vector.shape_cast %7 : vector<16x128xf32> to vector<2x8x128xf32>
    %cst = arith.constant dense<0.000000e+00> : vector<8x128xf32>
    %9 = vector.multi_reduction <add>, %8, %cst [0] : vector<2x8x128xf32> to vector<8x128xf32>
    %10 = arith.addf %6, %9 : vector<8x128xf32>
    %c0_6 = arith.constant 0 : index
    %c0_7 = arith.constant 0 : index
    %11 = vector.load %arg5[%c0_6, %c0_7] : memref<8x128xf32, #tpu.memory_space<vmem>>, vector<8x128xf32>
    tpu.vector_store %arg5[%c0_6, %c0_7], %10 {strides = array<i32>} : memref<8x128xf32, #tpu.memory_space<vmem>>, vector<8x128xf32>,
    %c0_i32_8 = arith.constant 0 : i32
    %12 = arith.cmpi eq, %arg1, %c0_i32_8 : i32
    %13 = arith.extui %12 : i1 to i32
    %c0_i32_9 = arith.constant 0 : i32
    %14 = arith.cmpi ne, %13, %c0_i32_9 : i32
    scf.if %14 {
      %c0_10 = arith.constant 0 : index
      %c0_11 = arith.constant 0 : index
      %15 = vector.load %arg5[%c0_10, %c0_11] : memref<8x128xf32, #tpu.memory_space<vmem>>, vector<8x128xf32>
      %16 = vector.shape_cast %15 : vector<8x128xf32> to vector<1x8x128xf32>
      %cst_12 = arith.constant dense<0.000000e+00> : vector<1xf32>
      %17 = vector.multi_reduction <add>, %16, %cst_12 [1, 2] : vector<1x8x128xf32> to vector<1xf32>
      %18 = vector.shape_cast %17 : vector<1xf32> to vector<1x1x1xf32>
      %19 = vector.extract %18[0, 0, 0] : f32 from vector<1x1x1xf32>
      %c0_13 = arith.constant 0 : index
      %c0_14 = arith.constant 0 : index
      %20 = memref.load %arg4[%c0_13, %c0_14] : memref<1x1xf32, #tpu.memory_space<smem>>
      memref.store %19, %arg4[%c0_13, %c0_14] : memref<1x1xf32, #tpu.memory_space<smem>>
    } else {
    }
    return
  }
  func.func @transform_0(%arg0: i32, %arg1: i32) -> (i32, i32) {
    %c1_i32 = arith.constant 1 : i32
    %0 = arith.muli %arg0, %c1_i32 : i32
    %1 = arith.addi %0, %arg1 : i32
    %c0_i32 = arith.constant 0 : i32
    %c0_i32_0 = arith.constant 0 : i32
    return %1, %c0_i32 : i32, i32
  }
  func.func @transform_1(%arg0: i32, %arg1: i32) -> (i32, i32) {
    %c1_i32 = arith.constant 1 : i32
    %0 = arith.muli %arg0, %c1_i32 : i32
    %1 = arith.addi %0, %arg1 : i32
    %c0_i32 = arith.constant 0 : i32
    %c0_i32_0 = arith.constant 0 : i32
    return %1, %c0_i32 : i32, i32
  }
  func.func @transform_2(%arg0: i32, %arg1: i32) -> (i32, i32) {
    %c0_i32 = arith.constant 0 : i32
    %c0_i32_0 = arith.constant 0 : i32
    return %arg0, %c0_i32 : i32, i32
  }
}

</mosaic_0001>

<llo_original>
// kernel: ct_loss.1
$region0: #{ct_loss.1}
  #allocation0 [shape = 'u32[]', space=smem, size = 0x4, offset = 0x4, fixed_abs, tag = 'smem constant byte address 0x4 - core index']
  #allocation1 [shape = 'u32[72,128]{1,0:T(1,128)}', space=vmem, size = 0x9000, scoped, tag = 'internal scratch']
  #allocation2 [shape = 'f32[8,128]{1,0:T(8,128)}', space=vmem, size = 0x1000, scoped, tag = 'scratch operand']
  %s0 = inlined_call_operand.vmem [shape: f32[16,128], index: 0, kind: input, shape index: {}]
  %s1 = inlined_call_operand.vmem [shape: f32[16,128], index: 1, kind: input, shape index: {}]
  %s2 = inlined_call_operand.hbm [shape: f32[1,1], index: 2, kind: output, shape index: {}]
  %s3 = sld [smem:[#allocation0]]
  $region26: #{ct_loss.1} parent=0
    _
  %s5 = ssub.s32 1, %s3
  %s6 = scalar_select 0, %s5, %s3
  $region1: #{ct_loss.1} parent=0
    #allocation3 [shape = 'u8[512]{0}', space=smem, size = 0x200, scoped, tag = 'output window, operand 0, single buffered']
    #allocation4 [shape = 's32[1]{0}', space=sflag, size = 0x4, scoped, tag = 'scoped memory for ct_loss.1']
    %7 = vsyncpa [#allocation4], 0
    // Predicated region
    $region2: #{ct_loss.1} parent=1 // pred_check
      _
    $region3: #{ct_loss.1} parent=1 // pred_check_branch
      %9 = sbr.rel (0) target = $region5
    $region4: #{ct_loss.1} parent=1 // pred_region
      %s10 = sadd.s32 0, 0
      %s11 = smul.u32 2, %s10
      %p12 = scmp.lt.s32.totalorder %s11, 1
      %s13 = scalar_select %p12, %s11, 1
      %s14 = smul.addr %s13, 8
      %s15 = scalar_lea.vmem %s0, %s14
      %s16 = sadd.s32 0, 0
      %s17 = smul.u32 2, %s16
    $region5: #{ct_loss.1} parent=1 // pred_fallthru
      _
    // Predicated region
    $region6: #{ct_loss.1} parent=1 // pred_check
      _
    $region7: #{ct_loss.1} parent=1 // pred_check_branch
      %19 = sbr.rel (0) target = $region9
    $region8: #{ct_loss.1} parent=1 // pred_region
      %s20 = sadd.s32 0, 0
      %s21 = smul.u32 2, %s20
      %p22 = scmp.lt.s32.totalorder %s21, 1
      %s23 = scalar_select %p22, %s21, 1
      %s24 = smul.addr %s23, 8
      %s25 = scalar_lea.vmem %s1, %s24
      %s26 = sadd.s32 0, 0
      %s27 = smul.u32 2, %s26
    $region9: #{ct_loss.1} parent=1 // pred_fallthru
      _
    %s28 = sadd.s32 0, 0
    %s29 = smul.u32 2, %s28
    %p30 = scmp.lt.s32.totalorder %s29, 1
    %s31 = scalar_select %p30, %s29, 1
    %s32 = smul.addr %s31, 8
    %s33 = scalar_lea.vmem %s0, %s32
    %s34 = sadd.s32 0, 0
    %s35 = smul.u32 2, %s34
    %p36 = scmp.lt.s32.totalorder %s35, 1
    %s37 = scalar_select %p36, %s35, 1
    %s38 = smul.addr %s37, 8
    %s39 = scalar_lea.vmem %s1, %s38
    %s40 = sadd.s32 0, 0
    %s41 = smul.u32 2, %s40
    %p42 = scmp.lt.s32.totalorder %s41, 1
    %s43 = scalar_select %p42, %s41, 1
    %s44 = smul.addr %s43, 8
    %s45 = scalar_lea.vmem %s0, %s44
    %s46 = sadd.s32 0, 0
    %s47 = smul.u32 2, %s46
    %s48 = sadd.s32 0, 0
    %s49 = smul.u32 2, %s48
    %p50 = scmp.lt.s32.totalorder %s49, 1
    %s51 = scalar_select %p50, %s49, 1
    %s52 = smul.addr %s51, 8
    %s53 = scalar_lea.vmem %s1, %s52
    %s54 = sadd.s32 0, 0
    %s55 = smul.u32 2, %s54
    %p56 = scmp.eq.s32.totalorder 0, 0
    // Predicated region
    $region10: #{ct_loss.1} parent=1 // pred_check
      %p57 = pneg %p56
    $region11: #{ct_loss.1} parent=1 // pred_check_branch
      %59 = sbr.rel (%p57) target = $region13
    $region12: #{ct_loss.1} parent=1 // pred_region
      %60 = vst [vmem:[#allocation2] sm:$0xff] 0.0
    $region13: #{ct_loss.1} parent=1 // pred_fallthru
      _
    %v61 = vld [vmem:[%s45] sm:$0xff]
    %v62 = vld [vmem:[%s45 + $0x8] sm:$0xff]
    %v63 = vld [vmem:[%s53] sm:$0xff]
    %v64 = vld [vmem:[%s53 + $0x8] sm:$0xff]
    %v65 = vsub.f32 %v61, %v63
    %v66 = vsub.f32 %v62, %v64
    %v67 = vld [vmem:[#allocation2] sm:$0xff]
    %v68 = vmul.f32 %v65, %v65
    %v69 = vmul.f32 %v66, %v66
    %v70 = vadd.f32 %v68, %v69
    %v71 = vadd.f32 %v67, %v70
    %72 = vst [vmem:[#allocation2] sm:$0xff] %v71
    // Predicated region
    $region14: #{ct_loss.1} parent=1 // pred_check
      %p73 = pneg %p56
    $region15: #{ct_loss.1} parent=1 // pred_check_branch
      %75 = sbr.rel (%p73) target = $region17
    $region16: #{ct_loss.1} parent=1 // pred_region
      %v76 = vld [vmem:[#allocation2] sm:$0xff]
      %77 = vadd.xlane.f32.xlu0 %v76
      %v78 = vpop.xlane.xlu0 %77
      %v79 = vrot.slane %v78, 4
      %v80 = vadd.f32 %v78, %v79
      %v81 = vrot.slane %v80, 2
      %v82 = vadd.f32 %v80, %v81
      %v83 = vrot.slane %v82, 1
      %v84 = vadd.f32 %v82, %v83
      %s85 = vtos %v84
      %s86 = scalar_lea.smem [#allocation3], 0
      %87 = sst [smem:[%s86]] %s85
    $region17: #{ct_loss.1} parent=1 // pred_fallthru
      _
    // Predicated region
    $region18: #{ct_loss.1} parent=1 // pred_check
      _
    $region19: #{ct_loss.1} parent=1 // pred_check_branch
      %89 = sbr.rel (0) target = $region21
    $region20: #{ct_loss.1} parent=1 // pred_region
      %91 = vsyncadd [#allocation4], 0
      %s93 = sshll.u32 %s2, 4
      %s94 = int_to_ptr.hbm [resolvable:$true] %s93
      %96 = dma.smem_to_hbm [#allocation3], 16, %s94, [#allocation4]
    $region21: #{ct_loss.1} parent=1 // pred_fallthru
      _
    // Predicated region
    $region22: #{ct_loss.1} parent=1 // pred_check
      _
    $region23: #{ct_loss.1} parent=1 // pred_check_branch
      %98 = sbr.rel (0) target = $region25
    $region24: #{ct_loss.1} parent=1 // pred_region
      %100 = dma.done [#allocation4], 16
    $region25: #{ct_loss.1} parent=1 // pred_fallthru
      _
    %101 = sfence
    %102 = vsyncpa [#allocation4], 1

</llo_original>
